<compile_context>
chip_gen: v5e
topology: v5e:2x2
jax: 0.10.0
libtpu: 0.0.40
codegen_flags: <defaults>
</compile_context>

<pallas_src>
import jax
import jax.numpy as jnp
from jax import lax
from jax.experimental import pallas as pl
from jax.experimental.pallas import tpu as pltpu


def _round_up(x, m):
    return ((x + m - 1) // m) * m


# Fused bf16 weight slab (WS) row layout, all blocks zero-padded to 128 cols:
#   rows   0: 64  generality_conv weight  (wg)            -> cols   0: 64
#   rows  64:128  weight_conv weight rows 0:64 (wwc)      -> cols  64:128
#   rows 128:192  network fc1 (wn1, applied to gf)        -> cols   0: 20
#   rows 192:256  weight_softmax (wws, applied to wo)     -> cols  32: 34
#   rows 256:320  link_classifier (wlc, applied to feat)  -> cols   0:  2
#   rows 320:352  network fc2 (wn2, applied to h; 0:20)   -> cols   2: 2+N
_WS_ROWS = 352

# f32 aux slab (8,128) row layout:
#   row 0: [bg | bwc]                  stage-1 bias
#   row 1: [0  | wwc[64, :]]           rank-1 weight for win's last column
#   row 2: [bn1 | 0 | bws | 0]         stage-2 bias (cols 0:20, 32:34)
#   row 3: [blc | bn2 | -1e30 ...]     tail bias; -1e30 masks pad lanes


# ---------------------------------------------------------------------------
# Kernel
# ---------------------------------------------------------------------------
def adversarial_kernel(edge_ref, win_ref, ws_ref, aux_ref, out_ref):
    edge_f = edge_ref[...]                           # (T, 64) f32
    win_f = win_ref[...]                             # (T, 65) f32
    edge_b = edge_f.astype(jnp.bfloat16)
    win64_b = win_f[:, 0:64].astype(jnp.bfloat16)
    win_last = win_f[:, 64:65]                       # (T, 1) f32

    b1 = aux_ref[0:1, :]                             # (1,128)
    r1 = aux_ref[1:2, :]                             # (1,128)
    b2 = aux_ref[2:3, :]                             # (1,128)
    b_tail = aux_ref[3:4, :]                         # (1,128)

    # Stage 1: generality_conv + weight_conv (Conv1d k=1 == matmul) + ReLU,
    # accumulated into one (T,128) slab = [gf | wo].
    slab1 = jnp.dot(edge_b, ws_ref[0:64, :], preferred_element_type=jnp.float32)
    slab1 = slab1 + jnp.dot(win64_b, ws_ref[64:128, :],
                            preferred_element_type=jnp.float32)
    slab1 = jnp.maximum(slab1 + win_last * r1 + b1, 0.0)        # (T,128) f32
    gf = slab1[:, 0:64]                                         # generality_feature

    # Stage 2 (fused): network fc1 (from gf) + weight_softmax logits (from wo).
    y2 = jnp.dot(slab1.astype(jnp.bfloat16), ws_ref[128:256, :],
                 preferred_element_type=jnp.float32) + b2       # (T,128) f32
    h = jnp.maximum(y2[:, 0:32], 0.0)                           # (T,32); 20:32 are 0
    # 2-way softmax via sigmoid-of-difference (exact division).
    w0 = 1.0 / (1.0 + jnp.exp(y2[:, 33:34] - y2[:, 32:33]))
    feature = gf * w0 + edge_f * (1.0 - w0)                     # (T,64) f32

    # Tail (fused): link_classifier + network fc2 into ONE logits slab that is
    # already in the packed output layout [link(2) | net(N) | pad].
    logits = jnp.dot(feature.astype(jnp.bfloat16), ws_ref[256:320, :],
                     preferred_element_type=jnp.float32)
    logits = logits + jnp.dot(h.astype(jnp.bfloat16), ws_ref[320:352, :],
                              preferred_element_type=jnp.float32)
    logits = logits + b_tail                                    # (T,128) f32

    # link softmax (2-way).
    l0 = 1.0 / (1.0 + jnp.exp(logits[:, 1:2] - logits[:, 0:1]))

    # network softmax over cols >= 2 (pad cols carry -1e30 bias -> exp == 0).
    lane = lax.broadcasted_iota(jnp.int32, logits.shape, 1)
    nl = jnp.where(lane >= 2, logits, -1e30)
    m = jnp.max(nl, axis=-1, keepdims=True)
    e = jnp.exp(nl - m)
    net = e / jnp.sum(e, axis=-1, keepdims=True)

    out = jnp.where(lane == 0, l0, jnp.where(lane == 1, 1.0 - l0, net))
    out_ref[...] = out.astype(out_ref.dtype)                    # lane-dense bf16 store


# ---------------------------------------------------------------------------
# Parameters (PyTorch-equivalent shapes, stored pre-transposed (in, out))
# ---------------------------------------------------------------------------
def init_params(key, in_dim, network_numbers):
    ks = jax.random.split(key, 12)
    s = 0.1

    def w(k, shape):
        return (s * jax.random.normal(k, shape)).astype(jnp.float32)

    return (
        w(ks[0], (in_dim, 64)),      w(ks[1], (1, 64)),                     # generality conv
        w(ks[2], (in_dim + 1, 64)),  w(ks[3], (1, 64)),                     # weight conv
        w(ks[4], (64, 2)),           w(ks[5], (1, 2)),                      # weight softmax
        w(ks[6], (64, 2)),           w(ks[7], (1, 2)),                      # link classifier
        w(ks[8], (64, 20)),          w(ks[9], (1, 20)),                     # network fc1
        w(ks[10], (20, network_numbers)), w(ks[11], (1, network_numbers)),  # network fc2
    )


def _prepare_params(params, network_numbers):
    """Fuse all weights into one bf16 slab + one f32 aux slab (host side, tiny)."""
    (wg, bg, wwc, bwc, wws, bws, wlc, blc, wn1, bn1, wn2, bn2) = params
    n = network_numbers

    ws = jnp.zeros((_WS_ROWS, 128), jnp.float32)
    ws = ws.at[0:64, 0:64].set(wg)
    ws = ws.at[64:128, 64:128].set(wwc[0:64, :])
    ws = ws.at[128:192, 0:20].set(wn1)
    ws = ws.at[192:256, 32:34].set(wws)
    ws = ws.at[256:320, 0:2].set(wlc)
    ws = ws.at[320:340, 2:2 + n].set(wn2)
    ws = ws.astype(jnp.bfloat16)

    aux = jnp.zeros((8, 128), jnp.float32)
    aux = aux.at[0, 0:64].set(bg[0]).at[0, 64:128].set(bwc[0])
    aux = aux.at[1, 64:128].set(wwc[64, :])
    aux = aux.at[2, 0:20].set(bn1[0]).at[2, 32:34].set(bws[0])
    aux = aux.at[3, 0:2].set(blc[0]).at[3, 2:2 + n].set(bn2[0])
    aux = aux.at[3, 2 + n:128].set(-1e30)
    return ws, aux


# ---------------------------------------------------------------------------
# Wrapper
# ---------------------------------------------------------------------------
def adversarial_forward(edge_embbing, weight_input, params, network_numbers,
                        coeff=1.0, block_b=4096):
    # coeff only affects the backward pass of grad_reverse; forward is identity.
    B = edge_embbing.shape[0]
    in_dim = edge_embbing.shape[-1]
    L = edge_embbing.shape[1] if edge_embbing.ndim == 3 else 1
    assert in_dim * L == 64, "Linear(64, ...) layers require 64 flattened features"
    assert (in_dim + 1) * L == 65
    assert 2 + network_numbers <= 128, "packed output assumes 2 + N <= 128"

    # Raw inputs go straight to the kernel (no wrapper-side repack / cast pass).
    edge2d = edge_embbing.reshape(B, 64).astype(jnp.float32)     # (B, 64)
    win2d = weight_input.reshape(B, 65).astype(jnp.float32)      # (B, 65)

    ws, aux = _prepare_params(params, network_numbers)

    # Batch tiling: large tiles (low per-step overhead), but >= 2 grid steps
    # whenever possible so both v7x TensorCores get work.  No input padding:
    # Pallas handles the partial last block (OOB rows are never stored).
    block_b = max(8, (block_b // 8) * 8)
    b16 = _round_up(B, 16)
    if b16 <= block_b:
        bt = max(8, b16 // 2)          # split into two tiles for v7x megacore
    else:
        bt = block_b
    nb = pl.cdiv(B, bt)

    out = pl.pallas_call(
        adversarial_kernel,
        out_shape=jax.ShapeDtypeStruct((B, 128), jnp.bfloat16),
        grid=(nb,),
        in_specs=[
            pl.BlockSpec((bt, 64), lambda i: (i, 0)),            # edge (f32)
            pl.BlockSpec((bt, 65), lambda i: (i, 0)),            # weight input (f32)
            pl.BlockSpec((_WS_ROWS, 128), lambda i: (0, 0)),     # resident weight slab
            pl.BlockSpec((8, 128), lambda i: (0, 0)),            # resident aux slab
        ],
        out_specs=pl.BlockSpec((bt, 128), lambda i: (i, 0)),
        compiler_params=pltpu.CompilerParams(
            dimension_semantics=("parallel",),
            vmem_limit_bytes=48 * 1024 * 1024),
    )(edge2d, win2d, ws, aux)

    link = out[:, 0:2].astype(jnp.float32)
    net = out[:, 2:2 + network_numbers].astype(jnp.float32)
    return link, net


# ---------------------------------------------------------------------------
# Pure-JAX reference (f32) for sanity checking
# ---------------------------------------------------------------------------
def _reference(edge_embbing, weight_input, params):
    (wg, bg, wwc, bwc, wws, bws, wlc, blc, wn1, bn1, wn2, bn2) = params
    B = edge_embbing.shape[0]
    edge = edge_embbing.reshape(B, -1)
    win = weight_input.reshape(B, -1)
    gf = jnp.maximum(edge @ wg + bg, 0.0)
    tf = edge
    wo = jnp.maximum(win @ wwc + bwc, 0.0)
    w = jax.nn.softmax(wo @ wws + bws, axis=1)
    feature = gf * w[:, 0:1] + tf * w[:, 1:2]
    link = jax.nn.softmax(feature @ wlc + blc, axis=1)
    h = jnp.maximum(gf @ wn1 + bn1, 0.0)
    net = jax.nn.softmax(h @ wn2 + bn2, axis=1)
    return link, net


if __name__ == "__main__":
    L = 1            # seq length must be 1 for the module's forward to typecheck
    IN_DIM = 64      # in_dim must be 64 (Linear(64, ...) on flattened features)
    NETWORK_NUMBERS = 5

    key = jax.random.PRNGKey(0)
    k_params, k_data = jax.random.split(key)
    params = init_params(k_params, IN_DIM, NETWORK_NUMBERS)

    # Two batch sizes: tiny (single partial tile) and one that exercises the
    # multi-step grid + partial last block path.
    for B in (2, 50):
        k_edge, k_win, k_data = jax.random.split(k_data, 3)
        edge_embbing = jax.random.normal(k_edge, (B, L, IN_DIM), dtype=jnp.float32)
        weight_input = jax.random.normal(k_win, (B, L, IN_DIM + 1), dtype=jnp.float32)

        link_out, net_out = adversarial_forward(
            edge_embbing, weight_input, params, NETWORK_NUMBERS, coeff=1.0)
        jax.block_until_ready((link_out, net_out))

        link_ref, net_ref = _reference(edge_embbing, weight_input, params)
        assert link_out.shape == (B, 2) and net_out.shape == (B, NETWORK_NUMBERS)
        # bf16 matmuls + bf16 output vs f32 reference -> loosened tolerance.
        assert jnp.allclose(link_out, link_ref, atol=2e-2, rtol=2e-2)
        assert jnp.allclose(net_out, net_ref, atol=2e-2, rtol=2e-2)

    print("KERNEL_OK")
</pallas_src>

<mosaic_0001>
module attributes {stable_mosaic.version = 11 : i64} {
  func.func @adversarial_kernel(%arg0: i32, %arg1: memref<8x64xf32, #tpu.memory_space<vmem>>, %arg2: memref<8x65xf32, #tpu.memory_space<vmem>>, %arg3: memref<352x128xbf16, #tpu.memory_space<vmem>>, %arg4: memref<8x128xf32, #tpu.memory_space<vmem>>, %arg5: memref<8x128xbf16, #tpu.memory_space<vmem>>) attributes {dimension_semantics = [#tpu.dimension_semantics<parallel>], iteration_bounds = array<i64: 1>, scalar_prefetch = 0 : i64, scratch_operands = 0 : i64, tpu.core_type = #tpu.core_type<tc>, window_params = [{transform_indices = @transform_0, window_bounds = array<i64: 8, 64>}, {transform_indices = @transform_1, window_bounds = array<i64: 8, 65>}, {pipeline_mode = #tpu.pipeline_mode<synchronous>, transform_indices = @transform_2, window_bounds = array<i64: 352, 128>}, {pipeline_mode = #tpu.pipeline_mode<synchronous>, transform_indices = @transform_3, window_bounds = array<i64: 8, 128>}, {transform_indices = @transform_4, window_bounds = array<i64: 8, 128>}]} {
    %c0 = arith.constant 0 : index
    %c0_0 = arith.constant 0 : index
    %0 = vector.load %arg1[%c0, %c0_0] : memref<8x64xf32, #tpu.memory_space<vmem>>, vector<8x64xf32>
    %c0_1 = arith.constant 0 : index
    %c0_2 = arith.constant 0 : index
    %1 = vector.load %arg2[%c0_1, %c0_2] : memref<8x65xf32, #tpu.memory_space<vmem>>, vector<8x65xf32>
    %2 = arith.truncf %0 : vector<8x64xf32> to vector<8x64xbf16>
    %3 = vector.extract_strided_slice %1 {offsets = [0, 0], sizes = [8, 64], strides = [1, 1]} : vector<8x65xf32> to vector<8x64xf32>
    %4 = arith.truncf %3 : vector<8x64xf32> to vector<8x64xbf16>
    %5 = vector.extract_strided_slice %1 {offsets = [0, 64], sizes = [8, 1], strides = [1, 1]} : vector<8x65xf32> to vector<8x1xf32>
    %c0_3 = arith.constant 0 : index
    %c0_4 = arith.constant 0 : index
    %6 = vector.load %arg4[%c0_3, %c0_4] : memref<8x128xf32, #tpu.memory_space<vmem>>, vector<1x128xf32>
    %c1 = arith.constant 1 : index
    %c0_5 = arith.constant 0 : index
    %7 = vector.load %arg4[%c1, %c0_5] : memref<8x128xf32, #tpu.memory_space<vmem>>, vector<1x128xf32>
    %c2 = arith.constant 2 : index
    %c0_6 = arith.constant 0 : index
    %8 = vector.load %arg4[%c2, %c0_6] : memref<8x128xf32, #tpu.memory_space<vmem>>, vector<1x128xf32>
    %c3 = arith.constant 3 : index
    %c0_7 = arith.constant 0 : index
    %9 = vector.load %arg4[%c3, %c0_7] : memref<8x128xf32, #tpu.memory_space<vmem>>, vector<1x128xf32>
    %c0_8 = arith.constant 0 : index
    %c0_9 = arith.constant 0 : index
    %10 = vector.load %arg3[%c0_8, %c0_9] : memref<352x128xbf16, #tpu.memory_space<vmem>>, vector<64x128xbf16>
    %cst = arith.constant dense<0.000000e+00> : vector<8x128xf32>
    %11 = tpu.matmul %2, %10, %cst {dimension_numbers = #tpu.dot_dimension_numbers<[1], [0], [0], [1], [0, 0, 1, 1], [], []>} : vector<8x64xbf16>, vector<64x128xbf16>, vector<8x128xf32> -> vector<8x128xf32>
    %c64 = arith.constant 64 : index
    %c0_10 = arith.constant 0 : index
    %12 = vector.load %arg3[%c64, %c0_10] : memref<352x128xbf16, #tpu.memory_space<vmem>>, vector<64x128xbf16>
    %cst_11 = arith.constant dense<0.000000e+00> : vector<8x128xf32>
    %13 = tpu.matmul %4, %12, %cst_11 {dimension_numbers = #tpu.dot_dimension_numbers<[1], [0], [0], [1], [0, 0, 1, 1], [], []>} : vector<8x64xbf16>, vector<64x128xbf16>, vector<8x128xf32> -> vector<8x128xf32>
    %14 = arith.addf %11, %13 : vector<8x128xf32>
    %15 = vector.broadcast %5 : vector<8x1xf32> to vector<8x128xf32>
    %16 = vector.broadcast %7 : vector<1x128xf32> to vector<8x128xf32>
    %17 = arith.mulf %15, %16 : vector<8x128xf32>
    %18 = arith.addf %14, %17 : vector<8x128xf32>
    %19 = vector.broadcast %6 : vector<1x128xf32> to vector<8x128xf32>
    %20 = arith.addf %18, %19 : vector<8x128xf32>
    %cst_12 = arith.constant 0.000000e+00 : f32
    %21 = vector.broadcast %cst_12 : f32 to vector<8x128xf32>
    %22 = arith.maximumf %20, %21 : vector<8x128xf32>
    %23 = vector.extract_strided_slice %22 {offsets = [0, 0], sizes = [8, 64], strides = [1, 1]} : vector<8x128xf32> to vector<8x64xf32>
    %24 = arith.truncf %22 : vector<8x128xf32> to vector<8x128xbf16>
    %c128 = arith.constant 128 : index
    %c0_13 = arith.constant 0 : index
    %25 = vector.load %arg3[%c128, %c0_13] : memref<352x128xbf16, #tpu.memory_space<vmem>>, vector<128x128xbf16>
    %cst_14 = arith.constant dense<0.000000e+00> : vector<8x128xf32>
    %26 = tpu.matmul %24, %25, %cst_14 {dimension_numbers = #tpu.dot_dimension_numbers<[1], [0], [0], [1], [0, 0, 1, 1], [], []>} : vector<8x128xbf16>, vector<128x128xbf16>, vector<8x128xf32> -> vector<8x128xf32>
    %27 = vector.broadcast %8 : vector<1x128xf32> to vector<8x128xf32>
    %28 = arith.addf %26, %27 : vector<8x128xf32>
    %29 = vector.extract_strided_slice %28 {offsets = [0, 0], sizes = [8, 32], strides = [1, 1]} : vector<8x128xf32> to vector<8x32xf32>
    %cst_15 = arith.constant 0.000000e+00 : f32
    %30 = vector.broadcast %cst_15 : f32 to vector<8x32xf32>
    %31 = arith.maximumf %29, %30 : vector<8x32xf32>
    %32 = vector.extract_strided_slice %28 {offsets = [0, 33], sizes = [8, 1], strides = [1, 1]} : vector<8x128xf32> to vector<8x1xf32>
    %33 = vector.extract_strided_slice %28 {offsets = [0, 32], sizes = [8, 1], strides = [1, 1]} : vector<8x128xf32> to vector<8x1xf32>
    %34 = arith.subf %32, %33 : vector<8x1xf32>
    %35 = math.exp %34 : vector<8x1xf32>
    %cst_16 = arith.constant 1.000000e+00 : f32
    %36 = vector.broadcast %cst_16 : f32 to vector<8x1xf32>
    %37 = arith.addf %36, %35 : vector<8x1xf32>
    %cst_17 = arith.constant 1.000000e+00 : f32
    %38 = vector.broadcast %cst_17 : f32 to vector<8x1xf32>
    %39 = arith.divf %38, %37 : vector<8x1xf32>
    %40 = vector.broadcast %39 : vector<8x1xf32> to vector<8x64xf32>
    %41 = arith.mulf %23, %40 : vector<8x64xf32>
    %cst_18 = arith.constant 1.000000e+00 : f32
    %42 = vector.broadcast %cst_18 : f32 to vector<8x1xf32>
    %43 = arith.subf %42, %39 : vector<8x1xf32>
    %44 = vector.broadcast %43 : vector<8x1xf32> to vector<8x64xf32>
    %45 = arith.mulf %0, %44 : vector<8x64xf32>
    %46 = arith.addf %41, %45 : vector<8x64xf32>
    %47 = arith.truncf %46 : vector<8x64xf32> to vector<8x64xbf16>
    %c256 = arith.constant 256 : index
    %c0_19 = arith.constant 0 : index
    %48 = vector.load %arg3[%c256, %c0_19] : memref<352x128xbf16, #tpu.memory_space<vmem>>, vector<64x128xbf16>
    %cst_20 = arith.constant dense<0.000000e+00> : vector<8x128xf32>
    %49 = tpu.matmul %47, %48, %cst_20 {dimension_numbers = #tpu.dot_dimension_numbers<[1], [0], [0], [1], [0, 0, 1, 1], [], []>} : vector<8x64xbf16>, vector<64x128xbf16>, vector<8x128xf32> -> vector<8x128xf32>
    %50 = arith.truncf %31 : vector<8x32xf32> to vector<8x32xbf16>
    %c320 = arith.constant 320 : index
    %c0_21 = arith.constant 0 : index
    %51 = vector.load %arg3[%c320, %c0_21] : memref<352x128xbf16, #tpu.memory_space<vmem>>, vector<32x128xbf16>
    %cst_22 = arith.constant dense<0.000000e+00> : vector<8x128xf32>
    %52 = tpu.matmul %50, %51, %cst_22 {dimension_numbers = #tpu.dot_dimension_numbers<[1], [0], [0], [1], [0, 0, 1, 1], [], []>} : vector<8x32xbf16>, vector<32x128xbf16>, vector<8x128xf32> -> vector<8x128xf32>
    %53 = arith.addf %49, %52 : vector<8x128xf32>
    %54 = vector.broadcast %9 : vector<1x128xf32> to vector<8x128xf32>
    %55 = arith.addf %53, %54 : vector<8x128xf32>
    %56 = vector.extract_strided_slice %55 {offsets = [0, 1], sizes = [8, 1], strides = [1, 1]} : vector<8x128xf32> to vector<8x1xf32>
    %57 = vector.extract_strided_slice %55 {offsets = [0, 0], sizes = [8, 1], strides = [1, 1]} : vector<8x128xf32> to vector<8x1xf32>
    %58 = arith.subf %56, %57 : vector<8x1xf32>
    %59 = math.exp %58 : vector<8x1xf32>
    %cst_23 = arith.constant 1.000000e+00 : f32
    %60 = vector.broadcast %cst_23 : f32 to vector<8x1xf32>
    %61 = arith.addf %60, %59 : vector<8x1xf32>
    %cst_24 = arith.constant 1.000000e+00 : f32
    %62 = vector.broadcast %cst_24 : f32 to vector<8x1xf32>
    %63 = arith.divf %62, %61 : vector<8x1xf32>
    %64 = tpu.iota {dimensions = array<i32: 1>} : vector<8x128xi32>
    %c2_i32 = arith.constant 2 : i32
    %65 = vector.broadcast %c2_i32 : i32 to vector<8x128xi32>
    %66 = arith.cmpi sge, %64, %65 : vector<8x128xi32>
    %cst_25 = arith.constant -1.000000e+30 : f32
    %67 = vector.broadcast %cst_25 : f32 to vector<8x128xf32>
    %68 = arith.select %66, %55, %67 : vector<8x128xi1>, vector<8x128xf32>
    %cst_26 = arith.constant dense<0xFF800000> : vector<8xf32>
    %69 = vector.multi_reduction <maximumf>, %68, %cst_26 [1] : vector<8x128xf32> to vector<8xf32>
    %70 = vector.shape_cast %69 : vector<8xf32> to vector<8x1xf32>
    %71 = vector.broadcast %70 : vector<8x1xf32> to vector<8x128xf32>
    %72 = arith.subf %68, %71 : vector<8x128xf32>
    %73 = math.exp %72 : vector<8x128xf32>
    %cst_27 = arith.constant dense<0.000000e+00> : vector<8xf32>
    %74 = vector.multi_reduction <add>, %73, %cst_27 [1] : vector<8x128xf32> to vector<8xf32>
    %75 = vector.shape_cast %74 : vector<8xf32> to vector<8x1xf32>
    %76 = vector.broadcast %75 : vector<8x1xf32> to vector<8x128xf32>
    %77 = arith.divf %73, %76 : vector<8x128xf32>
    %c0_i32 = arith.constant 0 : i32
    %78 = vector.broadcast %c0_i32 : i32 to vector<8x128xi32>
    %79 = arith.cmpi eq, %64, %78 : vector<8x128xi32>
    %c1_i32 = arith.constant 1 : i32
    %80 = vector.broadcast %c1_i32 : i32 to vector<8x128xi32>
    %81 = arith.cmpi eq, %64, %80 : vector<8x128xi32>
    %cst_28 = arith.constant 1.000000e+00 : f32
    %82 = vector.broadcast %cst_28 : f32 to vector<8x1xf32>
    %83 = arith.subf %82, %63 : vector<8x1xf32>
    %84 = vector.shape_cast %83 : vector<8x1xf32> to vector<8x1xf32>
    %85 = vector.broadcast %84 : vector<8x1xf32> to vector<8x128xf32>
    %86 = arith.select %81, %85, %77 : vector<8x128xi1>, vector<8x128xf32>
    %87 = vector.shape_cast %63 : vector<8x1xf32> to vector<8x1xf32>
    %88 = vector.broadcast %87 : vector<8x1xf32> to vector<8x128xf32>
    %89 = arith.select %79, %88, %86 : vector<8x128xi1>, vector<8x128xf32>
    %90 = arith.truncf %89 : vector<8x128xf32> to vector<8x128xbf16>
    %c0_29 = arith.constant 0 : index
    %c0_30 = arith.constant 0 : index
    %91 = vector.load %arg5[%c0_29, %c0_30] : memref<8x128xbf16, #tpu.memory_space<vmem>>, vector<8x128xbf16>
    tpu.vector_store %arg5[%c0_29, %c0_30], %90 {strides = array<i32>} : memref<8x128xbf16, #tpu.memory_space<vmem>>, vector<8x128xbf16>,
    return
  }
  func.func @transform_0(%arg0: i32) -> (i32, i32) {
    %c0_i32 = arith.constant 0 : i32
    %c0_i32_0 = arith.constant 0 : i32
    return %arg0, %c0_i32 : i32, i32
  }
  func.func @transform_1(%arg0: i32) -> (i32, i32) {
    %c0_i32 = arith.constant 0 : i32
    %c0_i32_0 = arith.constant 0 : i32
    return %arg0, %c0_i32 : i32, i32
  }
  func.func @transform_2(%arg0: i32) -> (i32, i32) {
    %c0_i32 = arith.constant 0 : i32
    %c0_i32_0 = arith.constant 0 : i32
    %c0_i32_1 = arith.constant 0 : i32
    return %c0_i32, %c0_i32_0 : i32, i32
  }
  func.func @transform_3(%arg0: i32) -> (i32, i32) {
    %c0_i32 = arith.constant 0 : i32
    %c0_i32_0 = arith.constant 0 : i32
    %c0_i32_1 = arith.constant 0 : i32
    return %c0_i32, %c0_i32_0 : i32, i32
  }
  func.func @transform_4(%arg0: i32) -> (i32, i32) {
    %c0_i32 = arith.constant 0 : i32
    %c0_i32_0 = arith.constant 0 : i32
    return %arg0, %c0_i32 : i32, i32
  }
}

</mosaic_0001>

<llo_original>
// kernel: tpu_custom_call.1
$region0: #{tpu_custom_call.1}
  #allocation0 [shape = 'u32[]', space=smem, size = 0x4, offset = 0x4, fixed_abs, tag = 'smem constant byte address 0x4 - core index']
  #allocation1 [shape = 'u32[72,128]{1,0:T(1,128)}', space=vmem, size = 0x9000, scoped, tag = 'internal scratch']
  %s0 = inlined_call_operand.hbm [shape: f32[2,64], index: 0, kind: input, shape index: {}]
  %s1 = inlined_call_operand.hbm [shape: f32[2,65], index: 1, kind: input, shape index: {}]
  %s2 = inlined_call_operand.hbm [shape: bf16[352,128], index: 2, kind: input, shape index: {}]
  %s3 = inlined_call_operand.hbm [shape: f32[8,128], index: 3, kind: input, shape index: {}]
  %s4 = inlined_call_operand.hbm [shape: bf16[2,128], index: 4, kind: output, shape index: {}]
  %s5 = sld [smem:[#allocation0]]
  $region42: #{tpu_custom_call.1} parent=0
    _
  %s7 = ssub.s32 1, %s5
  %s8 = scalar_select 0, %s7, %s5
  $region1: #{tpu_custom_call.1} parent=0
    #allocation2 [shape = 'u8[4096]{0}', space=vmem, size = 0x1000, scoped, tag = 'input window, operand 0, single buffered']
    #allocation3 [shape = 's32[1]{0}', space=sflag, size = 0x4, scoped, tag = 'scoped memory for tpu_custom_call.1']
    #allocation4 [shape = 's32[1]{0}', space=sflag, size = 0x4, scoped, tag = 'scoped memory for tpu_custom_call.1']
    #allocation5 [shape = 'u8[4096]{0}', space=vmem, size = 0x1000, scoped, tag = 'input window, operand 1, single buffered']
    #allocation6 [shape = 's32[1]{0}', space=sflag, size = 0x4, scoped, tag = 'scoped memory for tpu_custom_call.1']
    #allocation7 [shape = 'u8[90112]{0}', space=vmem, size = 0x16000, scoped, tag = 'input window, operand 2, single buffered']
    #allocation8 [shape = 'u8[4096]{0}', space=vmem, size = 0x1000, scoped, tag = 'input window, operand 3, single buffered']
    #allocation9 [shape = 's32[1]{0}', space=sflag, size = 0x4, scoped, tag = 'scoped memory for tpu_custom_call.1']
    #allocation10 [shape = 'u8[2048]{0}', space=vmem, size = 0x800, scoped, tag = 'output window, operand 0, single buffered']
    %9 = vsyncpa [#allocation3], 0
    %10 = vsyncpa [#allocation6], 0
    %11 = vsyncpa [#allocation9], 0
    %12 = vsyncpa [#allocation4], 0
    // Predicated region
    $region2: #{tpu_custom_call.1} parent=1 // pred_check
      _
    $region3: #{tpu_custom_call.1} parent=1 // pred_check_branch
      %14 = sbr.rel (0) target = $region5
    $region4: #{tpu_custom_call.1} parent=1 // pred_region
      %16 = vsyncadd [#allocation3], 96
      %s17 = sshll.u32 %s0, 4
      %s18 = int_to_ptr.hbm [resolvable:$true] %s17
      %s19 = sshll.u32 [#allocation2], 4
      %s20 = int_to_ptr.vmem [resolvable:$true] %s19
      %25 = dma.hbm_to_vmem [thread:$0]  %s18, 32, %s20, [#allocation3], 32, 32, 2
    $region5: #{tpu_custom_call.1} parent=1 // pred_fallthru
      _
    // Predicated region
    $region6: #{tpu_custom_call.1} parent=1 // pred_check
      _
    $region7: #{tpu_custom_call.1} parent=1 // pred_check_branch
      %27 = sbr.rel (0) target = $region9
    $region8: #{tpu_custom_call.1} parent=1 // pred_region
      %29 = vsyncadd [#allocation6], 96
      %s30 = sshll.u32 %s1, 4
      %s31 = int_to_ptr.hbm [resolvable:$true] %s30
      %s32 = sshll.u32 [#allocation5], 4
      %s33 = int_to_ptr.vmem [resolvable:$true] %s32
      %38 = dma.hbm_to_vmem [thread:$0]  %s31, 32, %s33, [#allocation6], 32, 32, 2
    $region9: #{tpu_custom_call.1} parent=1 // pred_fallthru
      _
    // Predicated region
    $region10: #{tpu_custom_call.1} parent=1 // pred_check
      _
    $region11: #{tpu_custom_call.1} parent=1 // pred_check_branch
      %40 = sbr.rel (0) target = $region13
    $region12: #{tpu_custom_call.1} parent=1 // pred_region
      %42 = vsyncadd [#allocation6], 0
      %s43 = sshll.u32 %s2, 4
      %s44 = int_to_ptr.hbm [resolvable:$true] %s43
      %s45 = sshll.u32 [#allocation7], 4
      %s46 = int_to_ptr.vmem [resolvable:$true] %s45
      %51 = dma.hbm_to_vmem [thread:$0]  %s44, 2816, %s46, [#allocation6], 64, 64, 4
    $region13: #{tpu_custom_call.1} parent=1 // pred_fallthru
      _
    // Predicated region
    $region14: #{tpu_custom_call.1} parent=1 // pred_check
      _
    $region15: #{tpu_custom_call.1} parent=1 // pred_check_branch
      %53 = sbr.rel (0) target = $region17
    $region16: #{tpu_custom_call.1} parent=1 // pred_region
      %55 = vsyncadd [#allocation9], 0
      %s57 = sshll.u32 %s3, 4
      %s58 = int_to_ptr.hbm [resolvable:$true] %s57
      %s59 = sshll.u32 [#allocation8], 4
      %s60 = int_to_ptr.vmem [resolvable:$true] %s59
      %62 = dma.hbm_to_vmem [thread:$0]  %s58, 128, %s60, [#allocation9]
    $region17: #{tpu_custom_call.1} parent=1 // pred_fallthru
      _
    // Predicated region
    $region18: #{tpu_custom_call.1} parent=1 // pred_check
      _
    $region19: #{tpu_custom_call.1} parent=1 // pred_check_branch
      %64 = sbr.rel (0) target = $region21
    $region20: #{tpu_custom_call.1} parent=1 // pred_region
      %66 = dma.done [#allocation3], 128
    $region21: #{tpu_custom_call.1} parent=1 // pred_fallthru
      _
    // Predicated region
    $region22: #{tpu_custom_call.1} parent=1 // pred_check
      _
    $region23: #{tpu_custom_call.1} parent=1 // pred_check_branch
      %68 = sbr.rel (0) target = $region25
    $region24: #{tpu_custom_call.1} parent=1 // pred_region
      %70 = dma.done [#allocation6], 128
    $region25: #{tpu_custom_call.1} parent=1 // pred_fallthru
      _
    // Predicated region
    $region26: #{tpu_custom_call.1} parent=1 // pred_check
      _
    $region27: #{tpu_custom_call.1} parent=1 // pred_check_branch
      %72 = sbr.rel (0) target = $region29
    $region28: #{tpu_custom_call.1} parent=1 // pred_region
      %74 = dma.done [#allocation6], 2816
    $region29: #{tpu_custom_call.1} parent=1 // pred_fallthru
      _
    // Predicated region
    $region30: #{tpu_custom_call.1} parent=1 // pred_check
      _
    $region31: #{tpu_custom_call.1} parent=1 // pred_check_branch
      %76 = sbr.rel (0) target = $region33
    $region32: #{tpu_custom_call.1} parent=1 // pred_region
      %78 = dma.done [#allocation9], 128
    $region33: #{tpu_custom_call.1} parent=1 // pred_fallthru
      _
    %v80 = vld [vmem:[#allocation2] sm:$0xff]
    %v81 = vld [vmem:[#allocation5] sm:$0xff]
    %v82 = vpack.c.bf16 %v80, %v80
    %v83 = vpack.c.bf16 %v81, %v81
    %v84 = vld [vmem:[#allocation8] sm:$0x1]
    %v85 = vld [vmem:[#allocation8 + $0x1] sm:$0x1]
    %v86 = vld [vmem:[#allocation8 + $0x2] sm:$0x1]
    %v87 = vld [vmem:[#allocation8 + $0x3] sm:$0x1]
    %v88 = vld [vmem:[#allocation7] sm:$0xf]
    %v89 = vld [vmem:[#allocation7 + $0x4] sm:$0xf]
    %v90 = vld [vmem:[#allocation7 + $0x8] sm:$0xf]
    %v91 = vld [vmem:[#allocation7 + $0xc] sm:$0xf]
    %v92 = vld [vmem:[#allocation7 + $0x10] sm:$0xf]
    %v93 = vld [vmem:[#allocation7 + $0x14] sm:$0xf]
    %v94 = vld [vmem:[#allocation7 + $0x18] sm:$0xf]
    %v95 = vld [vmem:[#allocation7 + $0x1c] sm:$0xf]
    %v96 = vld [vmem:[#allocation7 + $0x20] sm:$0xf]
    %v97 = vld [vmem:[#allocation7 + $0x24] sm:$0xf]
    %v98 = vld [vmem:[#allocation7 + $0x28] sm:$0xf]
    %v99 = vld [vmem:[#allocation7 + $0x2c] sm:$0xf]
    %v100 = vld [vmem:[#allocation7 + $0x30] sm:$0xf]
    %v101 = vld [vmem:[#allocation7 + $0x34] sm:$0xf]
    %v102 = vld [vmem:[#allocation7 + $0x38] sm:$0xf]
    %v103 = vld [vmem:[#allocation7 + $0x3c] sm:$0xf]
    %v112 = vunpack.c.l.b16 %v96
    %v113 = vunpack.c.l.b16 %v97
    %v114 = vunpack.c.l.b16 %v98
    %v115 = vunpack.c.l.b16 %v99
    %v116 = vunpack.c.l.b16 %v100
    %v117 = vunpack.c.l.b16 %v101
    %v118 = vunpack.c.l.b16 %v102
    %v119 = vunpack.c.l.b16 %v103
    %v120 = vpack.c.b16 %v113, %v112
    %v121 = vpack.c.b16 %v115, %v114
    %v122 = vpack.c.b16 %v117, %v116
    %v123 = vpack.c.b16 %v119, %v118
    %vm128 = vcmask 523264
    %v130 = vsel %vm128, %v83, 0
    %132 = vmatpush.bf16.msra.mxu0 0
    %133 = vmatpush.bf16.msra.mxu0 0
    %134 = vmatpush.bf16.msra.mxu0 0
    %135 = vmatpush.bf16.msra.mxu0 0
    %136 = vmatpush.bf16.msra.mxu0 %v123
    %137 = vmatpush.bf16.msra.mxu0 %v122
    %138 = vmatpush.bf16.msra.mxu0 %v121
    %139 = vmatpush.bf16.msra.mxu0 %v120
    %140 = vmatmul.bf16.gmra.mxu0 %v130
    %v141 = vpop.f32.mrf.mxu0
    %v142 = vadd.f32 0.0, %v141
    %v143 = vpop.f32.mrf.mxu0
    %144 = vdwg.mxu0
    %v153 = vunpack.c.l.b16 %v88
    %v154 = vunpack.c.l.b16 %v89
    %v155 = vunpack.c.l.b16 %v90
    %v156 = vunpack.c.l.b16 %v91
    %v157 = vunpack.c.l.b16 %v92
    %v158 = vunpack.c.l.b16 %v93
    %v159 = vunpack.c.l.b16 %v94
    %v160 = vunpack.c.l.b16 %v95
    %v161 = vpack.c.b16 %v154, %v153
    %v162 = vpack.c.b16 %v156, %v155
    %v163 = vpack.c.b16 %v158, %v157
    %v164 = vpack.c.b16 %v160, %v159
    %v170 = vsel %vm128, %v82, 0
    %172 = vmatpush.bf16.msra.mxu0 0
    %173 = vmatpush.bf16.msra.mxu0 0
    %174 = vmatpush.bf16.msra.mxu0 0
    %175 = vmatpush.bf16.msra.mxu0 0
    %176 = vmatpush.bf16.msra.mxu0 %v164
    %177 = vmatpush.bf16.msra.mxu0 %v163
    %178 = vmatpush.bf16.msra.mxu0 %v162
    %179 = vmatpush.bf16.msra.mxu0 %v161
    %180 = vmatmul.bf16.gmra.mxu0 %v170
    %v181 = vpop.f32.mrf.mxu0
    %v182 = vadd.f32 %v142, %v181
    %v183 = vpop.f32.mrf.mxu0
    %184 = vdwg.mxu0
    %186 = vset.pattern.permute.xlu0 64
    %187 = vperm.xlu0 %186, %v81
    %v188 = vpop.permute.xlu0 %187
    %v190 = vperm.slane %v85, 0
    %v191 = vmul.f32 %v188, %v190
    %v192 = vadd.f32 %v182, %v191
    %v193 = vperm.slane %v84, 0
    %v194 = vadd.f32 %v192, %v193
    %v195 = vmax.f32 %v194, 0.0
    %v196 = vpack.c.bf16 %v195, %v195
    %v197 = vld [vmem:[#allocation7 + $0x40] sm:$0xf]
    %v198 = vld [vmem:[#allocation7 + $0x44] sm:$0xf]
    %v199 = vld [vmem:[#allocation7 + $0x48] sm:$0xf]
    %v200 = vld [vmem:[#allocation7 + $0x4c] sm:$0xf]
    %v201 = vld [vmem:[#allocation7 + $0x50] sm:$0xf]
    %v202 = vld [vmem:[#allocation7 + $0x54] sm:$0xf]
    %v203 = vld [vmem:[#allocation7 + $0x58] sm:$0xf]
    %v204 = vld [vmem:[#allocation7 + $0x5c] sm:$0xf]
    %v205 = vld [vmem:[#allocation7 + $0x60] sm:$0xf]
    %v206 = vld [vmem:[#allocation7 + $0x64] sm:$0xf]
    %v207 = vld [vmem:[#allocation7 + $0x68] sm:$0xf]
    %v208 = vld [vmem:[#allocation7 + $0x6c] sm:$0xf]
    %v209 = vld [vmem:[#allocation7 + $0x70] sm:$0xf]
    %v210 = vld [vmem:[#allocation7 + $0x74] sm:$0xf]
    %v211 = vld [vmem:[#allocation7 + $0x78] sm:$0xf]
    %v212 = vld [vmem:[#allocation7 + $0x7c] sm:$0xf]
    %v213 = vperm.slane %v86, 0
    %v230 = vunpack.c.l.b16 %v197
    %v231 = vunpack.c.l.b16 %v198
    %v232 = vunpack.c.l.b16 %v199
    %v233 = vunpack.c.l.b16 %v200
    %v234 = vunpack.c.l.b16 %v201
    %v235 = vunpack.c.l.b16 %v202
    %v236 = vunpack.c.l.b16 %v203
    %v237 = vunpack.c.l.b16 %v204
    %v238 = vunpack.c.l.b16 %v205
    %v239 = vunpack.c.l.b16 %v206
    %v240 = vunpack.c.l.b16 %v207
    %v241 = vunpack.c.l.b16 %v208
    %v242 = vunpack.c.l.b16 %v209
    %v243 = vunpack.c.l.b16 %v210
    %v244 = vunpack.c.l.b16 %v211
    %v245 = vunpack.c.l.b16 %v212
    %v246 = vpack.c.b16 %v231, %v230
    %v247 = vpack.c.b16 %v233, %v232
    %v248 = vpack.c.b16 %v235, %v234
    %v249 = vpack.c.b16 %v237, %v236
    %v250 = vpack.c.b16 %v239, %v238
    %v251 = vpack.c.b16 %v241, %v240
    %v252 = vpack.c.b16 %v243, %v242
    %v253 = vpack.c.b16 %v245, %v244
    %262 = vmatpush.bf16.msra.mxu0 %v253
    %263 = vmatpush.bf16.msra.mxu0 %v252
    %264 = vmatpush.bf16.msra.mxu0 %v251
    %265 = vmatpush.bf16.msra.mxu0 %v250
    %266 = vmatpush.bf16.msra.mxu0 %v249
    %267 = vmatpush.bf16.msra.mxu0 %v248
    %268 = vmatpush.bf16.msra.mxu0 %v247
    %269 = vmatpush.bf16.msra.mxu0 %v246
    %270 = vmatmul.bf16.gmra.mxu0 %v196
    %v271 = vpop.f32.mrf.mxu0
    %v272 = vadd.f32 %v213, %v271
    %v273 = vpop.f32.mrf.mxu0
    %274 = vdwg.mxu0
    %v275 = vmax.f32 %v272, 0.0
    %277 = vrot.lane.b32.xlu0 %v272, 1
    %v278 = vpop.permute.xlu0 %277
    %v280 = vsub.f32 %v272, %v278
    %v281 = vmul.f32 %v280, 1.442695
    %v282 = vpow.pop %v281
    %v283 = vadd.f32 %v282, 1.0
    %v284 = vrcp.pop %v283
    %v285 = vmul.f32 %v283, %v284
    %v286 = vsub.f32 1.0, %v285
    %v287 = vmul.f32 %v284, %v286
    %v288 = vadd.f32 %v284, %v287
    %vm289 = vweird.f32 %v283
    %vm290 = vweird.f32 %v284
    %vm291 = vmor %vm289, %vm290
    %v292 = vsel %vm291, %v284, %v288
    %v293 = vand.u32 2147483647, %v283
    %vm294 = vcmp.eq.f32.partialorder %v293, 8.507059e+37
    %v295 = vand.u32 %v283, 2147483648
    %v296 = vor.u32 1.1754944e-38, %v295
    %v297 = vsel %vm294, %v296, %v292
    %v298 = vmul.f32 1.0, %v297
    %300 = vset.pattern.permute.xlu0 33
    %301 = vperm.xlu0 %300, %v298
    %v302 = vpop.permute.xlu0 %301
    %v304 = vmul.f32 %v195, %v302
    %v305 = vsub.f32 1.0, %v298
    %307 = vset.pattern.permute.xlu0 33
    %308 = vperm.xlu0 %307, %v305
    %v309 = vpop.permute.xlu0 %308
    %v311 = vmul.f32 %v80, %v309
    %v312 = vadd.f32 %v304, %v311
    %v313 = vpack.c.bf16 %v312, %v312
    %v314 = vld [vmem:[#allocation7 + $0x80] sm:$0xf]
    %v315 = vld [vmem:[#allocation7 + $0x84] sm:$0xf]
    %v316 = vld [vmem:[#allocation7 + $0x88] sm:$0xf]
    %v317 = vld [vmem:[#allocation7 + $0x8c] sm:$0xf]
    %v318 = vld [vmem:[#allocation7 + $0x90] sm:$0xf]
    %v319 = vld [vmem:[#allocation7 + $0x94] sm:$0xf]
    %v320 = vld [vmem:[#allocation7 + $0x98] sm:$0xf]
    %v321 = vld [vmem:[#allocation7 + $0x9c] sm:$0xf]
    %v322 = vpack.c.bf16 %v275, %v275
    %v323 = vld [vmem:[#allocation7 + $0xa0] sm:$0xf]
    %v324 = vld [vmem:[#allocation7 + $0xa4] sm:$0xf]
    %v325 = vld [vmem:[#allocation7 + $0xa8] sm:$0xf]
    %v326 = vld [vmem:[#allocation7 + $0xac] sm:$0xf]
    %v331 = vunpack.c.l.b16 %v323
    %v332 = vunpack.c.l.b16 %v324
    %v333 = vunpack.c.l.b16 %v325
    %v334 = vunpack.c.l.b16 %v326
    %v335 = vpack.c.b16 %v332, %v331
    %v336 = vpack.c.b16 %v334, %v333
    %vm339 = vcmask 261120
    %v341 = vsel %vm339, %v322, 0
    %343 = vmatpush.bf16.msra.mxu0 0
    %344 = vmatpush.bf16.msra.mxu0 0
    %345 = vmatpush.bf16.msra.mxu0 0
    %346 = vmatpush.bf16.msra.mxu0 0
    %347 = vmatpush.bf16.msra.mxu0 0
    %348 = vmatpush.bf16.msra.mxu0 0
    %349 = vmatpush.bf16.msra.mxu0 %v336
    %350 = vmatpush.bf16.msra.mxu0 %v335
    %351 = vmatmul.bf16.gmra.mxu0 %v341
    %v352 = vpop.f32.mrf.mxu0
    %v353 = vadd.f32 0.0, %v352
    %v354 = vpop.f32.mrf.mxu0
    %355 = vdwg.mxu0
    %v364 = vunpack.c.l.b16 %v314
    %v365 = vunpack.c.l.b16 %v315
    %v366 = vunpack.c.l.b16 %v316
    %v367 = vunpack.c.l.b16 %v317
    %v368 = vunpack.c.l.b16 %v318
    %v369 = vunpack.c.l.b16 %v319
    %v370 = vunpack.c.l.b16 %v320
    %v371 = vunpack.c.l.b16 %v321
    %v372 = vpack.c.b16 %v365, %v364
    %v373 = vpack.c.b16 %v367, %v366
    %v374 = vpack.c.b16 %v369, %v368
    %v375 = vpack.c.b16 %v371, %v370
    %v381 = vsel %vm128, %v313, 0
    %383 = vmatpush.bf16.msra.mxu0 0
    %384 = vmatpush.bf16.msra.mxu0 0
    %385 = vmatpush.bf16.msra.mxu0 0
    %386 = vmatpush.bf16.msra.mxu0 0
    %387 = vmatpush.bf16.msra.mxu0 %v375
    %388 = vmatpush.bf16.msra.mxu0 %v374
    %389 = vmatpush.bf16.msra.mxu0 %v373
    %390 = vmatpush.bf16.msra.mxu0 %v372
    %391 = vmatmul.bf16.gmra.mxu0 %v381
    %v392 = vpop.f32.mrf.mxu0
    %v393 = vadd.f32 %v353, %v392
    %v394 = vpop.f32.mrf.mxu0
    %395 = vdwg.mxu0
    %v396 = vperm.slane %v87, 0
    %v397 = vadd.f32 %v393, %v396
    %399 = vrot.lane.b32.xlu0 %v397, 1
    %v400 = vpop.permute.xlu0 %399
    %v402 = vsub.f32 %v397, %v400
    %v403 = vmul.f32 %v402, 1.442695
    %v404 = vpow.pop %v403
    %v405 = vadd.f32 %v404, 1.0
    %v406 = vrcp.pop %v405
    %v407 = vmul.f32 %v405, %v406
    %v408 = vsub.f32 1.0, %v407
    %v409 = vmul.f32 %v406, %v408
    %v410 = vadd.f32 %v406, %v409
    %vm411 = vweird.f32 %v405
    %vm412 = vweird.f32 %v406
    %vm413 = vmor %vm411, %vm412
    %v414 = vsel %vm413, %v406, %v410
    %v415 = vand.u32 2147483647, %v405
    %vm416 = vcmp.eq.f32.partialorder %v415, 8.507059e+37
    %v417 = vand.u32 %v405, 2147483648
    %v418 = vor.u32 1.1754944e-38, %v417
    %v419 = vsel %vm416, %v418, %v414
    %v420 = vmul.f32 1.0, %v419
    %v421 = vlaneseq
    %v422 = vand.u32 %v421, 127
    %vm423 = vcmp.ge.s32.totalorder %v422, 2
    %v424 = vsel %vm423, %v397, -1e+30
    %425 = vmax.xlane.f32.xlu0 %v424
    %v426 = vpop.xlane.xlu0 %425
    %v427 = vsub.f32 %v424, %v426
    %v428 = vmul.f32 %v427, 1.442695
    %v429 = vpow.pop %v428
    %430 = vadd.xlane.f32.xlu0 %v429
    %v431 = vpop.xlane.xlu0 %430
    %v432 = vrcp.pop %v431
    %v433 = vmul.f32 %v431, %v432
    %v434 = vsub.f32 1.0, %v433
    %v435 = vmul.f32 %v432, %v434
    %v436 = vadd.f32 %v432, %v435
    %vm437 = vweird.f32 %v431
    %vm438 = vweird.f32 %v432
    %vm439 = vmor %vm437, %vm438
    %v440 = vsel %vm439, %v432, %v436
    %v441 = vand.u32 2147483647, %v431
    %vm442 = vcmp.eq.f32.partialorder %v441, 8.507059e+37
    %v443 = vand.u32 %v431, 2147483648
    %v444 = vor.u32 1.1754944e-38, %v443
    %v445 = vsel %vm442, %v444, %v440
    %v446 = vmul.f32 %v429, %v445
    %vm447 = vcmp.eq.s32.totalorder %v422, 0
    %vm448 = vcmp.eq.s32.totalorder %v422, 1
    %v449 = vsub.f32 1.0, %v420
    %451 = vset.pattern.permute.xlu0 1
    %452 = vperm.xlu0 %451, %v449
    %v453 = vpop.permute.xlu0 %452
    %v455 = vsel %vm448, %v453, %v446
    %457 = vset.pattern.permute.xlu0 1
    %458 = vperm.xlu0 %457, %v420
    %v459 = vpop.permute.xlu0 %458
    %v461 = vsel %vm447, %v459, %v455
    %v462 = vpack.c.bf16 %v461, %v461
    %v464 = vrot.slane %v462, 3
    %vm465 = vcmask 1040384
    %v468 = vsel %vm465, %v462, %v464
    %vm469 = vcmask 1041409
    %v470 = vsel %vm469, %v462, %v464
    %v472 = vrot.slane %v470, 1
    %vm473 = vcmask 1042434
    %v474 = vsel %vm473, %v462, %v464
    %v476 = vrot.slane %v474, 2
    %vm477 = vcmask 1043459
    %v478 = vsel %vm477, %v462, %v464
    %v480 = vrot.slane %v478, 3
    %485 = vst [vmem:[#allocation10] sm:$0x1] %v468
    %486 = vst [vmem:[#allocation10 + $0x1] sm:$0x1] %v472
    %487 = vst [vmem:[#allocation10 + $0x2] sm:$0x1] %v476
    %488 = vst [vmem:[#allocation10 + $0x3] sm:$0x1] %v480
    // Predicated region
    $region34: #{tpu_custom_call.1} parent=1 // pred_check
      _
    $region35: #{tpu_custom_call.1} parent=1 // pred_check_branch
      %490 = sbr.rel (0) target = $region37
    $region36: #{tpu_custom_call.1} parent=1 // pred_region
      %492 = vsyncadd [#allocation4], 48
      %s493 = sshll.u32 [#allocation10], 4
      %s494 = int_to_ptr.vmem [resolvable:$true] %s493
      %s495 = sshll.u32 %s4, 4
      %s496 = int_to_ptr.hbm [resolvable:$true] %s495
      %501 = dma.vmem_to_hbm [thread:$0]  %s494, 16, %s496, [#allocation4], 16, 16, 1
    $region37: #{tpu_custom_call.1} parent=1 // pred_fallthru
      _
    // Predicated region
    $region38: #{tpu_custom_call.1} parent=1 // pred_check
      _
    $region39: #{tpu_custom_call.1} parent=1 // pred_check_branch
      %503 = sbr.rel (0) target = $region41
    $region40: #{tpu_custom_call.1} parent=1 // pred_region
      %505 = dma.done [#allocation4], 64
    $region41: #{tpu_custom_call.1} parent=1 // pred_fallthru
      _
    %506 = vsyncpa [#allocation3], 1
    %507 = vsyncpa [#allocation6], 1
    %508 = vsyncpa [#allocation9], 1
    %509 = vsyncpa [#allocation4], 1

</llo_original>
